<compile_context>
chip_gen: v7x
topology: tpu7x:2x2x1
jax: 0.10.0
libtpu: 0.0.40
codegen_flags: <defaults>
</compile_context>

<pallas_src>
import functools
import math

import jax
import jax.numpy as jnp
from jax import lax
from jax.experimental import pallas as pl
from jax.experimental.pallas import tpu as pltpu

LANES = 128
SUBLANES = 8
CHUNK_ROWS = 512          # in-kernel accumulation chunk (256 KiB f32 per stream)
LOG2 = math.log(2.0)


def _ceil_to(v, m):
    return -(-v // m) * m


def _sublane_multiple(dtype):
    # f32 -> 8 rows per vreg tile, bf16 -> 16, int8/fp8 -> 32.
    return max(SUBLANES, 32 // max(1, jnp.dtype(dtype).itemsize))


def _build_kernel(tile_rows, chunk_rows, n_chunks, full_rows, rem_lanes, needs_mask):
    """Builds the kernel body, closing over the static tiling parameters."""

    def kernel(z_ref, x_ref, s2_ref, c3_ref, w_ref, out_ref, gae_acc, bce_acc):
        i = pl.program_id(1)

        @pl.when(i == 0)
        def _():
            gae_acc[...] = jnp.zeros_like(gae_acc)
            bce_acc[...] = jnp.zeros_like(bce_acc)

        # Global row offset of this tile (only needed for tail masking).
        tile_row0 = (pl.program_id(0) * pl.num_programs(1) + i) * tile_rows

        def chunk_body(c):
            r0 = c * chunk_rows
            if not isinstance(r0, int):
                r0 = pl.multiple_of(r0, chunk_rows)
            sl = pl.ds(r0, chunk_rows)
            z = z_ref[sl, :].astype(jnp.float32)
            x = x_ref[sl, :].astype(jnp.float32)
            s2 = s2_ref[sl, :].astype(jnp.float32)
            c3 = c3_ref[sl, :].astype(jnp.float32)
            w = w_ref[sl, :].astype(jnp.float32)

            # GAE term; the constant part1 = log(2) is folded into the wrapper.
            #   (0.5 - x + s2)*z + c3*z^2 == z * ((0.5 - x + s2) + c3*z)
            gae = z * ((jnp.float32(0.5) - x + s2) + c3 * z)

            # Weighted BCE; torch clamps the logs at -100 BEFORE the multiply.
            log_z = jnp.maximum(jnp.log(z), jnp.float32(-100.0))
            log_1mz = jnp.maximum(jnp.log(1.0 - z), jnp.float32(-100.0))
            #   x*log_z + (1-x)*log_1mz == log_1mz + x*(log_z - log_1mz)
            bce = -w * (log_1mz + x * (log_z - log_1mz))

            if needs_mask:
                # Mask off grid rows past the real data and the padded lanes of
                # the final ragged 128-lane row: OOB / padded elements contribute
                # exactly 0 independent of any clamp-ordering algebra.
                row_g = tile_row0 + r0 + lax.broadcasted_iota(
                    jnp.int32, (chunk_rows, LANES), 0)
                if rem_lanes == 0:
                    valid = row_g < full_rows
                else:
                    lane = lax.broadcasted_iota(jnp.int32, (chunk_rows, LANES), 1)
                    valid = (row_g < full_rows) | (
                        (row_g == full_rows) & (lane < rem_lanes))
                gae = jnp.where(valid, gae, jnp.float32(0.0))
                bce = jnp.where(valid, bce, jnp.float32(0.0))

            # Fold the chunk into (8,128) vreg accumulators (pure VPU adds);
            # the single cross-lane/sublane reduce happens once, in the epilogue.
            gae_acc[...] += gae.reshape(-1, SUBLANES, LANES).sum(axis=0)
            bce_acc[...] += bce.reshape(-1, SUBLANES, LANES).sum(axis=0)

        if n_chunks == 1:
            chunk_body(0)
        else:
            lax.fori_loop(0, n_chunks,
                          lambda c, carry: (chunk_body(c), carry)[1], 0,
                          unroll=n_chunks <= 8)

        @pl.when(i == pl.num_programs(1) - 1)
        def _():
            out_ref[0, 0] = jnp.sum(gae_acc[...])
            out_ref[0, 1] = jnp.sum(bce_acc[...])

    return kernel


@functools.partial(jax.jit, static_argnames=("max_tile_rows", "core_parallel"))
def gae_loss(z, x, sample2, coefficient3, weight_tensor, *,
             max_tile_rows=None, core_parallel=None):
    """Returns (loss, Floss) as float32 scalars, matching GAE_Loss.forward."""
    arrays = [jnp.asarray(a) for a in (z, x, sample2, coefficient3, weight_tensor)]
    total = math.prod(arrays[1].shape)

    device_kind = jax.devices()[0].device_kind.lower()
    row_mult = max(_sublane_multiple(a.dtype) for a in arrays)

    if max_tile_rows is None:
        # v5e: 16 MiB default scoped VMEM -> hold at 2048 rows (10 MiB dbl-buf).
        # v6e / v7x: 32 MiB default -> 4096 rows (20 MiB dbl-buf); chunked
        # accumulation keeps per-chunk intermediates ~0.25 MiB each, so no
        # vmem_limit_bytes bump is required.
        max_tile_rows = 2048 if "v5" in device_kind else 4096

    array_rows = -(-total // LANES)             # ceil(total / 128)
    pad_to = array_rows * LANES

    # Tile height in rows; always a multiple of the packing-aware sublane tile.
    if array_rows <= max_tile_rows:
        tile_rows = array_rows if array_rows % row_mult == 0 \
            else _ceil_to(array_rows, row_mult)
    else:
        tile_rows = max((max_tile_rows // row_mult) * row_mult, row_mult)
    n_tiles = -(-array_rows // tile_rows)

    # Leading grid axis: 2-way split so v7x's two TensorCores each take half of
    # the scan; on 1-TC chips it is simply the outer loop.  Skip the split when
    # an odd tile count would add a (masked) wasted tile that is a large
    # fraction of the work.
    num_splits = 2 if (n_tiles >= 2 and (n_tiles % 2 == 0 or n_tiles >= 8)) else 1
    tiles_per_split = -(-n_tiles // num_splits)
    grid_rows = num_splits * tiles_per_split * tile_rows

    # In-kernel tail mask replaces the old full-slab zero padding.
    needs_mask = grid_rows * LANES != total
    full_rows = total // LANES
    rem_lanes = total % LANES

    # Chunk size for in-kernel accumulation (must divide tile_rows).
    chunk_rows = min(CHUNK_ROWS, tile_rows)
    chunk_rows -= chunk_rows % row_mult
    while tile_rows % chunk_rows:
        chunk_rows -= row_mult
    n_chunks = tile_rows // chunk_rows

    def flat(a):
        f = a.reshape(-1)
        if pad_to != total:
            # TODO(synk): only taken when numel % 128 != 0 — jnp.pad still copies
            # the stream.  Lane-divisible inputs (the common case) are now a
            # free reshape: no HBM copy, no dtype upcast.
            f = jnp.pad(f, (0, pad_to - total))
        return f.reshape(array_rows, LANES)

    z2, x2, s22, c32, w2 = (flat(a) for a in arrays)

    tile_spec = pl.BlockSpec((tile_rows, LANES),
                             lambda c, i: (c * tiles_per_split + i, 0))
    out_spec = pl.BlockSpec((1, 2), lambda c, i: (c, 0),
                            memory_space=pltpu.SMEM)

    if core_parallel is None:
        # Plain "parallel" is a codegen no-op on v7x; only CORE_PARALLEL
        # actually shards the split axis across its two TensorCores.
        core_parallel = (num_splits > 1) and ("v7" in device_kind)
    if core_parallel:
        dim_sem = (pltpu.CORE_PARALLEL, pltpu.ARBITRARY)
    else:
        dim_sem = ("parallel", "arbitrary")

    kernel = _build_kernel(tile_rows, chunk_rows, n_chunks,
                           full_rows, rem_lanes, needs_mask)

    partials = pl.pallas_call(
        kernel,
        out_shape=jax.ShapeDtypeStruct((num_splits, 2), jnp.float32),
        grid_spec=pltpu.PrefetchScalarGridSpec(
            num_scalar_prefetch=0,
            grid=(num_splits, tiles_per_split),
            in_specs=[tile_spec] * 5,
            out_specs=out_spec,
            scratch_shapes=[pltpu.VMEM((SUBLANES, LANES), jnp.float32),
                            pltpu.VMEM((SUBLANES, LANES), jnp.float32)],
        ),
        compiler_params=pltpu.CompilerParams(dimension_semantics=dim_sem),
    )(z2, x2, s22, c32, w2)

    sums = partials.sum(axis=0)
    inv_n = jnp.float32(1.0 / total)
    loss = sums[0] * inv_n + jnp.float32(LOG2)   # fold part1 = log(2) back in
    floss = sums[1] * inv_n
    return loss, floss


def _reference(z, x, sample2, c3, w):
    z = jnp.asarray(z).astype(jnp.float32)
    x = jnp.asarray(x).astype(jnp.float32)
    sample2 = jnp.asarray(sample2).astype(jnp.float32)
    c3 = jnp.asarray(c3).astype(jnp.float32)
    w = jnp.asarray(w).astype(jnp.float32)
    result = jnp.log(2.0) + (0.5 - x + sample2) * z + c3 * z * z
    loss = jnp.mean(result)
    log_z = jnp.maximum(jnp.log(z), -100.0)
    log_1mz = jnp.maximum(jnp.log(1.0 - z), -100.0)
    floss = jnp.mean(-w * (x * log_z + (1.0 - x) * log_1mz))
    return loss, floss


def _make_inputs(key, shape, dtype=jnp.float32):
    k1, k2, k3, k4, k5 = jax.random.split(key, 5)
    # z must be a probability in (0, 1) (it is fed to binary_cross_entropy).
    z = jax.nn.sigmoid(jax.random.normal(k1, shape, dtype=jnp.float32))
    x = jax.random.uniform(k2, shape, dtype=jnp.float32)           # targets in [0,1]
    sample2 = 0.1 * jax.random.normal(k3, shape, dtype=jnp.float32)
    coefficient3 = jnp.full(shape, 1.0 / 8.0, dtype=jnp.float32) + \
        0.01 * jax.random.normal(k4, shape, dtype=jnp.float32)
    weight_tensor = jax.random.uniform(k5, shape, dtype=jnp.float32,
                                       minval=0.5, maxval=1.5)
    return tuple(a.astype(dtype) for a in
                 (z, x, sample2, coefficient3, weight_tensor))


if __name__ == "__main__":
    key = jax.random.PRNGKey(0)
    ka, kb, kc = jax.random.split(key, 3)

    # 1) NCHW demo shape, f32: lane-divisible -> zero-copy (no pad), single tile.
    shape = (2, 4, 16, 16)
    args = _make_inputs(ka, shape)
    loss, floss = gae_loss(*args)
    jax.block_until_ready((loss, floss))
    ref_loss, ref_floss = _reference(*args)
    assert jnp.allclose(loss, ref_loss, rtol=1e-5, atol=1e-5), (loss, ref_loss)
    assert jnp.allclose(floss, ref_floss, rtol=1e-5, atol=1e-5), (floss, ref_floss)

    # 2) Non-lane-divisible shape with small tiles: exercises the in-kernel
    #    ragged-tail mask, multi-step accumulation, partial final block and the
    #    2-way split axis.
    shape2 = (2, 3, 33, 29)
    args2 = _make_inputs(kb, shape2)
    loss2, floss2 = gae_loss(*args2, max_tile_rows=8)
    jax.block_until_ready((loss2, floss2))
    ref_loss2, ref_floss2 = _reference(*args2)
    assert jnp.allclose(loss2, ref_loss2, rtol=1e-5, atol=1e-5), (loss2, ref_loss2)
    assert jnp.allclose(floss2, ref_floss2, rtol=1e-5, atol=1e-5), (floss2, ref_floss2)

    # 3) bf16 inputs: exercises native-dtype streaming with in-kernel f32 cast
    #    (halves HBM bytes vs. the old wrapper upcast).
    args3 = _make_inputs(kc, shape, dtype=jnp.bfloat16)
    loss3, floss3 = gae_loss(*args3)
    jax.block_until_ready((loss3, floss3))
    ref_loss3, ref_floss3 = _reference(*args3)
    assert jnp.allclose(loss3, ref_loss3, rtol=1e-4, atol=1e-4), (loss3, ref_loss3)
    assert jnp.allclose(floss3, ref_floss3, rtol=1e-4, atol=1e-4), (floss3, ref_floss3)

    print("KERNEL_OK")
</pallas_src>

<mosaic_0001>
module attributes {stable_mosaic.version = 11 : i64} {
  func.func @kernel(%arg0: i32, %arg1: i32, %arg2: memref<16x128xf32, #tpu.memory_space<vmem>>, %arg3: memref<16x128xf32, #tpu.memory_space<vmem>>, %arg4: memref<16x128xf32, #tpu.memory_space<vmem>>, %arg5: memref<16x128xf32, #tpu.memory_space<vmem>>, %arg6: memref<16x128xf32, #tpu.memory_space<vmem>>, %arg7: memref<1x2xf32, #tpu.memory_space<smem>>, %arg8: memref<8x128xf32, #tpu.memory_space<vmem>>, %arg9: memref<8x128xf32, #tpu.memory_space<vmem>>) attributes {dimension_semantics = [#tpu.dimension_semantics<parallel>, #tpu.dimension_semantics<arbitrary>], iteration_bounds = array<i64: 1, 1>, scalar_prefetch = 0 : i64, scratch_operands = 2 : i64, tpu.core_type = #tpu.core_type<tc>, window_params = [{transform_indices = @transform_0, window_bounds = array<i64: 16, 128>}, {transform_indices = @transform_1, window_bounds = array<i64: 16, 128>}, {transform_indices = @transform_2, window_bounds = array<i64: 16, 128>}, {transform_indices = @transform_3, window_bounds = array<i64: 16, 128>}, {transform_indices = @transform_4, window_bounds = array<i64: 16, 128>}, {transform_indices = @transform_5, window_bounds = array<i64: 1, 2>}]} {
    %c0_i32 = arith.constant 0 : i32
    %0 = arith.cmpi eq, %arg1, %c0_i32 : i32
    %1 = arith.extui %0 : i1 to i32
    %c0_i32_0 = arith.constant 0 : i32
    %2 = arith.cmpi ne, %1, %c0_i32_0 : i32
    scf.if %2 {
      %cst_26 = arith.constant 0.000000e+00 : f32
      %41 = vector.broadcast %cst_26 : f32 to vector<8x128xf32>
      %c0_27 = arith.constant 0 : index
      %c0_28 = arith.constant 0 : index
      %42 = vector.load %arg8[%c0_27, %c0_28] : memref<8x128xf32, #tpu.memory_space<vmem>>, vector<8x128xf32>
      tpu.vector_store %arg8[%c0_27, %c0_28], %41 {strides = array<i32>} : memref<8x128xf32, #tpu.memory_space<vmem>>, vector<8x128xf32>,
      %cst_29 = arith.constant 0.000000e+00 : f32
      %43 = vector.broadcast %cst_29 : f32 to vector<8x128xf32>
      %c0_30 = arith.constant 0 : index
      %c0_31 = arith.constant 0 : index
      %44 = vector.load %arg9[%c0_30, %c0_31] : memref<8x128xf32, #tpu.memory_space<vmem>>, vector<8x128xf32>
      tpu.vector_store %arg9[%c0_30, %c0_31], %43 {strides = array<i32>} : memref<8x128xf32, #tpu.memory_space<vmem>>, vector<8x128xf32>,
    } else {
    }
    %c0 = arith.constant 0 : index
    %c0_1 = arith.constant 0 : index
    %3 = vector.load %arg2[%c0, %c0_1] : memref<16x128xf32, #tpu.memory_space<vmem>>, vector<16x128xf32>
    %c0_2 = arith.constant 0 : index
    %c0_3 = arith.constant 0 : index
    %4 = vector.load %arg3[%c0_2, %c0_3] : memref<16x128xf32, #tpu.memory_space<vmem>>, vector<16x128xf32>
    %c0_4 = arith.constant 0 : index
    %c0_5 = arith.constant 0 : index
    %5 = vector.load %arg4[%c0_4, %c0_5] : memref<16x128xf32, #tpu.memory_space<vmem>>, vector<16x128xf32>
    %c0_6 = arith.constant 0 : index
    %c0_7 = arith.constant 0 : index
    %6 = vector.load %arg5[%c0_6, %c0_7] : memref<16x128xf32, #tpu.memory_space<vmem>>, vector<16x128xf32>
    %c0_8 = arith.constant 0 : index
    %c0_9 = arith.constant 0 : index
    %7 = vector.load %arg6[%c0_8, %c0_9] : memref<16x128xf32, #tpu.memory_space<vmem>>, vector<16x128xf32>
    %cst = arith.constant 5.000000e-01 : f32
    %8 = vector.broadcast %cst : f32 to vector<16x128xf32>
    %9 = arith.subf %8, %4 : vector<16x128xf32>
    %10 = arith.addf %9, %5 : vector<16x128xf32>
    %11 = arith.mulf %6, %3 : vector<16x128xf32>
    %12 = arith.addf %10, %11 : vector<16x128xf32>
    %13 = arith.mulf %3, %12 : vector<16x128xf32>
    %14 = math.log %3 : vector<16x128xf32>
    %cst_10 = arith.constant -1.000000e+02 : f32
    %15 = vector.broadcast %cst_10 : f32 to vector<16x128xf32>
    %16 = arith.maximumf %14, %15 : vector<16x128xf32>
    %cst_11 = arith.constant 1.000000e+00 : f32
    %17 = vector.broadcast %cst_11 : f32 to vector<16x128xf32>
    %18 = arith.subf %17, %3 : vector<16x128xf32>
    %19 = math.log %18 : vector<16x128xf32>
    %cst_12 = arith.constant -1.000000e+02 : f32
    %20 = vector.broadcast %cst_12 : f32 to vector<16x128xf32>
    %21 = arith.maximumf %19, %20 : vector<16x128xf32>
    %cst_13 = arith.constant 0.000000e+00 : f32
    %22 = vector.broadcast %cst_13 : f32 to vector<16x128xf32>
    %23 = arith.subf %22, %7 : vector<16x128xf32>
    %24 = arith.subf %16, %21 : vector<16x128xf32>
    %25 = arith.mulf %4, %24 : vector<16x128xf32>
    %26 = arith.addf %21, %25 : vector<16x128xf32>
    %27 = arith.mulf %23, %26 : vector<16x128xf32>
    %c0_14 = arith.constant 0 : index
    %c0_15 = arith.constant 0 : index
    %28 = vector.load %arg8[%c0_14, %c0_15] : memref<8x128xf32, #tpu.memory_space<vmem>>, vector<8x128xf32>
    %29 = vector.shape_cast %13 : vector<16x128xf32> to vector<2x8x128xf32>
    %cst_16 = arith.constant dense<0.000000e+00> : vector<8x128xf32>
    %30 = vector.multi_reduction <add>, %29, %cst_16 [0] : vector<2x8x128xf32> to vector<8x128xf32>
    %31 = arith.addf %28, %30 : vector<8x128xf32>
    %c0_17 = arith.constant 0 : index
    %c0_18 = arith.constant 0 : index
    %32 = vector.load %arg8[%c0_17, %c0_18] : memref<8x128xf32, #tpu.memory_space<vmem>>, vector<8x128xf32>
    tpu.vector_store %arg8[%c0_17, %c0_18], %31 {strides = array<i32>} : memref<8x128xf32, #tpu.memory_space<vmem>>, vector<8x128xf32>,
    %c0_19 = arith.constant 0 : index
    %c0_20 = arith.constant 0 : index
    %33 = vector.load %arg9[%c0_19, %c0_20] : memref<8x128xf32, #tpu.memory_space<vmem>>, vector<8x128xf32>
    %34 = vector.shape_cast %27 : vector<16x128xf32> to vector<2x8x128xf32>
    %cst_21 = arith.constant dense<0.000000e+00> : vector<8x128xf32>
    %35 = vector.multi_reduction <add>, %34, %cst_21 [0] : vector<2x8x128xf32> to vector<8x128xf32>
    %36 = arith.addf %33, %35 : vector<8x128xf32>
    %c0_22 = arith.constant 0 : index
    %c0_23 = arith.constant 0 : index
    %37 = vector.load %arg9[%c0_22, %c0_23] : memref<8x128xf32, #tpu.memory_space<vmem>>, vector<8x128xf32>
    tpu.vector_store %arg9[%c0_22, %c0_23], %36 {strides = array<i32>} : memref<8x128xf32, #tpu.memory_space<vmem>>, vector<8x128xf32>,
    %c0_i32_24 = arith.constant 0 : i32
    %38 = arith.cmpi eq, %arg1, %c0_i32_24 : i32
    %39 = arith.extui %38 : i1 to i32
    %c0_i32_25 = arith.constant 0 : i32
    %40 = arith.cmpi ne, %39, %c0_i32_25 : i32
    scf.if %40 {
      %c0_26 = arith.constant 0 : index
      %c0_27 = arith.constant 0 : index
      %41 = vector.load %arg8[%c0_26, %c0_27] : memref<8x128xf32, #tpu.memory_space<vmem>>, vector<8x128xf32>
      %42 = vector.shape_cast %41 : vector<8x128xf32> to vector<1x8x128xf32>
      %cst_28 = arith.constant dense<0.000000e+00> : vector<1xf32>
      %43 = vector.multi_reduction <add>, %42, %cst_28 [1, 2] : vector<1x8x128xf32> to vector<1xf32>
      %44 = vector.shape_cast %43 : vector<1xf32> to vector<1x1x1xf32>
      %45 = vector.extract %44[0, 0, 0] : f32 from vector<1x1x1xf32>
      %c0_29 = arith.constant 0 : index
      %c0_30 = arith.constant 0 : index
      %46 = memref.load %arg7[%c0_29, %c0_30] : memref<1x2xf32, #tpu.memory_space<smem>>
      memref.store %45, %arg7[%c0_29, %c0_30] : memref<1x2xf32, #tpu.memory_space<smem>>
      %c0_31 = arith.constant 0 : index
      %c0_32 = arith.constant 0 : index
      %47 = vector.load %arg9[%c0_31, %c0_32] : memref<8x128xf32, #tpu.memory_space<vmem>>, vector<8x128xf32>
      %48 = vector.shape_cast %47 : vector<8x128xf32> to vector<1x8x128xf32>
      %cst_33 = arith.constant dense<0.000000e+00> : vector<1xf32>
      %49 = vector.multi_reduction <add>, %48, %cst_33 [1, 2] : vector<1x8x128xf32> to vector<1xf32>
      %50 = vector.shape_cast %49 : vector<1xf32> to vector<1x1x1xf32>
      %51 = vector.extract %50[0, 0, 0] : f32 from vector<1x1x1xf32>
      %c0_34 = arith.constant 0 : index
      %c1 = arith.constant 1 : index
      %52 = memref.load %arg7[%c0_34, %c1] : memref<1x2xf32, #tpu.memory_space<smem>>
      memref.store %51, %arg7[%c0_34, %c1] : memref<1x2xf32, #tpu.memory_space<smem>>
    } else {
    }
    return
  }
  func.func @transform_0(%arg0: i32, %arg1: i32) -> (i32, i32) {
    %c1_i32 = arith.constant 1 : i32
    %0 = arith.muli %arg0, %c1_i32 : i32
    %1 = arith.addi %0, %arg1 : i32
    %c0_i32 = arith.constant 0 : i32
    %c0_i32_0 = arith.constant 0 : i32
    return %1, %c0_i32 : i32, i32
  }
  func.func @transform_1(%arg0: i32, %arg1: i32) -> (i32, i32) {
    %c1_i32 = arith.constant 1 : i32
    %0 = arith.muli %arg0, %c1_i32 : i32
    %1 = arith.addi %0, %arg1 : i32
    %c0_i32 = arith.constant 0 : i32
    %c0_i32_0 = arith.constant 0 : i32
    return %1, %c0_i32 : i32, i32
  }
  func.func @transform_2(%arg0: i32, %arg1: i32) -> (i32, i32) {
    %c1_i32 = arith.constant 1 : i32
    %0 = arith.muli %arg0, %c1_i32 : i32
    %1 = arith.addi %0, %arg1 : i32
    %c0_i32 = arith.constant 0 : i32
    %c0_i32_0 = arith.constant 0 : i32
    return %1, %c0_i32 : i32, i32
  }
  func.func @transform_3(%arg0: i32, %arg1: i32) -> (i32, i32) {
    %c1_i32 = arith.constant 1 : i32
    %0 = arith.muli %arg0, %c1_i32 : i32
    %1 = arith.addi %0, %arg1 : i32
    %c0_i32 = arith.constant 0 : i32
    %c0_i32_0 = arith.constant 0 : i32
    return %1, %c0_i32 : i32, i32
  }
  func.func @transform_4(%arg0: i32, %arg1: i32) -> (i32, i32) {
    %c1_i32 = arith.constant 1 : i32
    %0 = arith.muli %arg0, %c1_i32 : i32
    %1 = arith.addi %0, %arg1 : i32
    %c0_i32 = arith.constant 0 : i32
    %c0_i32_0 = arith.constant 0 : i32
    return %1, %c0_i32 : i32, i32
  }
  func.func @transform_5(%arg0: i32, %arg1: i32) -> (i32, i32) {
    %c0_i32 = arith.constant 0 : i32
    %c0_i32_0 = arith.constant 0 : i32
    return %arg0, %c0_i32 : i32, i32
  }
}

</mosaic_0001>

<llo_original>
// kernel: gae_loss.1
$region0: #{gae_loss.1}
  #allocation0 [shape = 'u32[]', space=smem, size = 0x4, offset = 0x4, fixed_abs, tag = 'smem constant byte address 0x4 - core index']
  #allocation1 [shape = 'u32[144,128]{1,0:T(1,128)}', space=vmem, size = 0x12000, scoped, tag = 'internal scratch']
  #allocation2 [shape = 'f32[8,128]{1,0:T(8,128)}', space=vmem, size = 0x1000, scoped, tag = 'scratch operand']
  #allocation3 [shape = 'f32[8,128]{1,0:T(8,128)}', space=vmem, size = 0x1000, scoped, tag = 'scratch operand']
  %s0 = inlined_call_operand.vmem [shape: f32[16,128], index: 0, kind: input, shape index: {}]
  %s1 = inlined_call_operand.vmem [shape: f32[16,128], index: 1, kind: input, shape index: {}]
  %s2 = inlined_call_operand.vmem [shape: f32[16,128], index: 2, kind: input, shape index: {}]
  %s3 = inlined_call_operand.vmem [shape: f32[16,128], index: 3, kind: input, shape index: {}]
  %s4 = inlined_call_operand.vmem [shape: f32[16,128], index: 4, kind: input, shape index: {}]
  %s5 = inlined_call_operand.vmem [shape: f32[1,2], index: 5, kind: output, shape index: {}]
  %s6 = sld [smem:[#allocation0]]
  $region38: #{gae_loss.1} parent=0
    _
  %s8 = ssub.s32 1, %s6
  %s9 = scalar_select 0, %s8, %s6
  $region1: #{gae_loss.1} parent=0
    #allocation4 [shape = 'u8[512]{0}', space=smem, size = 0x200, scoped, tag = 'output window, operand 0, single buffered']
    #allocation5 [shape = 's32[1]{0}', space=sflag, size = 0x4, scoped, tag = 'scoped memory for gae_loss.1']
    %10 = vsyncpa [#allocation5], 0
    // Predicated region
    $region2: #{gae_loss.1} parent=1 // pred_check
      _
    $region3: #{gae_loss.1} parent=1 // pred_check_branch
      %12 = sbr.rel (0) target = $region5
    $region4: #{gae_loss.1} parent=1 // pred_region
      %s13 = sadd.s32 0, 0
      %s14 = smul.u32 2, %s13
      %p15 = scmp.lt.s32.totalorder %s14, 1
      %s16 = scalar_select %p15, %s14, 1
      %s17 = smul.addr %s16, 8
      %s18 = scalar_lea.vmem %s0, %s17
      %s19 = sadd.s32 0, 0
      %s20 = smul.u32 2, %s19
    $region5: #{gae_loss.1} parent=1 // pred_fallthru
      _
    // Predicated region
    $region6: #{gae_loss.1} parent=1 // pred_check
      _
    $region7: #{gae_loss.1} parent=1 // pred_check_branch
      %22 = sbr.rel (0) target = $region9
    $region8: #{gae_loss.1} parent=1 // pred_region
      %s23 = sadd.s32 0, 0
      %s24 = smul.u32 2, %s23
      %p25 = scmp.lt.s32.totalorder %s24, 1
      %s26 = scalar_select %p25, %s24, 1
      %s27 = smul.addr %s26, 8
      %s28 = scalar_lea.vmem %s1, %s27
      %s29 = sadd.s32 0, 0
      %s30 = smul.u32 2, %s29
    $region9: #{gae_loss.1} parent=1 // pred_fallthru
      _
    // Predicated region
    $region10: #{gae_loss.1} parent=1 // pred_check
      _
    $region11: #{gae_loss.1} parent=1 // pred_check_branch
      %32 = sbr.rel (0) target = $region13
    $region12: #{gae_loss.1} parent=1 // pred_region
      %s33 = sadd.s32 0, 0
      %s34 = smul.u32 2, %s33
      %p35 = scmp.lt.s32.totalorder %s34, 1
      %s36 = scalar_select %p35, %s34, 1
      %s37 = smul.addr %s36, 8
      %s38 = scalar_lea.vmem %s2, %s37
      %s39 = sadd.s32 0, 0
      %s40 = smul.u32 2, %s39
    $region13: #{gae_loss.1} parent=1 // pred_fallthru
      _
    // Predicated region
    $region14: #{gae_loss.1} parent=1 // pred_check
      _
    $region15: #{gae_loss.1} parent=1 // pred_check_branch
      %42 = sbr.rel (0) target = $region17
    $region16: #{gae_loss.1} parent=1 // pred_region
      %s43 = sadd.s32 0, 0
      %s44 = smul.u32 2, %s43
      %p45 = scmp.lt.s32.totalorder %s44, 1
      %s46 = scalar_select %p45, %s44, 1
      %s47 = smul.addr %s46, 8
      %s48 = scalar_lea.vmem %s3, %s47
      %s49 = sadd.s32 0, 0
      %s50 = smul.u32 2, %s49
    $region17: #{gae_loss.1} parent=1 // pred_fallthru
      _
    // Predicated region
    $region18: #{gae_loss.1} parent=1 // pred_check
      _
    $region19: #{gae_loss.1} parent=1 // pred_check_branch
      %52 = sbr.rel (0) target = $region21
    $region20: #{gae_loss.1} parent=1 // pred_region
      %s53 = sadd.s32 0, 0
      %s54 = smul.u32 2, %s53
      %p55 = scmp.lt.s32.totalorder %s54, 1
      %s56 = scalar_select %p55, %s54, 1
      %s57 = smul.addr %s56, 8
      %s58 = scalar_lea.vmem %s4, %s57
      %s59 = sadd.s32 0, 0
      %s60 = smul.u32 2, %s59
    $region21: #{gae_loss.1} parent=1 // pred_fallthru
      _
    %s61 = sadd.s32 0, 0
    %s62 = smul.u32 2, %s61
    %p63 = scmp.lt.s32.totalorder %s62, 1
    %s64 = scalar_select %p63, %s62, 1
    %s65 = smul.addr %s64, 8
    %s66 = scalar_lea.vmem %s0, %s65
    %s67 = sadd.s32 0, 0
    %s68 = smul.u32 2, %s67
    %p69 = scmp.lt.s32.totalorder %s68, 1
    %s70 = scalar_select %p69, %s68, 1
    %s71 = smul.addr %s70, 8
    %s72 = scalar_lea.vmem %s1, %s71
    %s73 = sadd.s32 0, 0
    %s74 = smul.u32 2, %s73
    %p75 = scmp.lt.s32.totalorder %s74, 1
    %s76 = scalar_select %p75, %s74, 1
    %s77 = smul.addr %s76, 8
    %s78 = scalar_lea.vmem %s2, %s77
    %s79 = sadd.s32 0, 0
    %s80 = smul.u32 2, %s79
    %p81 = scmp.lt.s32.totalorder %s80, 1
    %s82 = scalar_select %p81, %s80, 1
    %s83 = smul.addr %s82, 8
    %s84 = scalar_lea.vmem %s3, %s83
    %s85 = sadd.s32 0, 0
    %s86 = smul.u32 2, %s85
    %p87 = scmp.lt.s32.totalorder %s86, 1
    %s88 = scalar_select %p87, %s86, 1
    %s89 = smul.addr %s88, 8
    %s90 = scalar_lea.vmem %s4, %s89
    %s91 = sadd.s32 0, 0
    %s92 = smul.u32 2, %s91
    %p93 = scmp.lt.s32.totalorder %s92, 1
    %s94 = scalar_select %p93, %s92, 1
    %s95 = smul.addr %s94, 8
    %s96 = scalar_lea.vmem %s0, %s95
    %s97 = sadd.s32 0, 0
    %s98 = smul.u32 2, %s97
    %s99 = sadd.s32 0, 0
    %s100 = smul.u32 2, %s99
    %p101 = scmp.lt.s32.totalorder %s100, 1
    %s102 = scalar_select %p101, %s100, 1
    %s103 = smul.addr %s102, 8
    %s104 = scalar_lea.vmem %s1, %s103
    %s105 = sadd.s32 0, 0
    %s106 = smul.u32 2, %s105
    %s107 = sadd.s32 0, 0
    %s108 = smul.u32 2, %s107
    %p109 = scmp.lt.s32.totalorder %s108, 1
    %s110 = scalar_select %p109, %s108, 1
    %s111 = smul.addr %s110, 8
    %s112 = scalar_lea.vmem %s2, %s111
    %s113 = sadd.s32 0, 0
    %s114 = smul.u32 2, %s113
    %s115 = sadd.s32 0, 0
    %s116 = smul.u32 2, %s115
    %p117 = scmp.lt.s32.totalorder %s116, 1
    %s118 = scalar_select %p117, %s116, 1
    %s119 = smul.addr %s118, 8
    %s120 = scalar_lea.vmem %s3, %s119
    %s121 = sadd.s32 0, 0
    %s122 = smul.u32 2, %s121
    %s123 = sadd.s32 0, 0
    %s124 = smul.u32 2, %s123
    %p125 = scmp.lt.s32.totalorder %s124, 1
    %s126 = scalar_select %p125, %s124, 1
    %s127 = smul.addr %s126, 8
    %s128 = scalar_lea.vmem %s4, %s127
    %s129 = sadd.s32 0, 0
    %s130 = smul.u32 2, %s129
    %p131 = scmp.eq.s32.totalorder 0, 0
    // Predicated region
    $region22: #{gae_loss.1} parent=1 // pred_check
      %p132 = pneg %p131
    $region23: #{gae_loss.1} parent=1 // pred_check_branch
      %134 = sbr.rel (%p132) target = $region25
    $region24: #{gae_loss.1} parent=1 // pred_region
      %135 = vst [vmem:[#allocation2] sm:$0xff] 0.0
      %136 = vst [vmem:[#allocation3] sm:$0xff] 0.0
    $region25: #{gae_loss.1} parent=1 // pred_fallthru
      _
    %v137 = vld [vmem:[%s96] sm:$0xff]
    %v138 = vld [vmem:[%s96 + $0x8] sm:$0xff]
    %v139 = vld [vmem:[%s104] sm:$0xff]
    %v140 = vld [vmem:[%s104 + $0x8] sm:$0xff]
    %v141 = vld [vmem:[%s112] sm:$0xff]
    %v142 = vld [vmem:[%s112 + $0x8] sm:$0xff]
    %v143 = vld [vmem:[%s120] sm:$0xff]
    %v144 = vld [vmem:[%s120 + $0x8] sm:$0xff]
    %v145 = vld [vmem:[%s128] sm:$0xff]
    %v146 = vld [vmem:[%s128 + $0x8] sm:$0xff]
    %v147 = vsub.f32 0.5, %v139
    %v148 = vsub.f32 0.5, %v140
    %v149 = vadd.f32 %v147, %v141
    %v150 = vadd.f32 %v148, %v142
    %v151 = vmul.f32 %v143, %v137
    %v152 = vmul.f32 %v144, %v138
    %v153 = vadd.f32 %v149, %v151
    %v154 = vadd.f32 %v150, %v152
    %v155 = vmul.f32 %v137, %v153
    %v156 = vmul.f32 %v138, %v154
    %v157 = vlog2.pop %v137
    %v158 = vmul.f32 %v157, 0.6931472
    %v159 = vlog2.pop %v138
    %v160 = vmul.f32 %v159, 0.6931472
    %v161 = vmax.f32 %v158, -100.0
    %v162 = vmax.f32 %v160, -100.0
    %v163 = vsub.f32 1.0, %v137
    %v164 = vsub.f32 1.0, %v138
    %v165 = vlog2.pop %v163
    %v166 = vmul.f32 %v165, 0.6931472
    %v167 = vlog2.pop %v164
    %v168 = vmul.f32 %v167, 0.6931472
    %v169 = vmax.f32 %v166, -100.0
    %v170 = vmax.f32 %v168, -100.0
    %v171 = vsub.f32 0.0, %v145
    %v172 = vsub.f32 0.0, %v146
    %v173 = vsub.f32 %v161, %v169
    %v174 = vsub.f32 %v162, %v170
    %v175 = vmul.f32 %v139, %v173
    %v176 = vmul.f32 %v140, %v174
    %v177 = vadd.f32 %v169, %v175
    %v178 = vadd.f32 %v170, %v176
    %v179 = vmul.f32 %v171, %v177
    %v180 = vmul.f32 %v172, %v178
    %v181 = vld [vmem:[#allocation2] sm:$0xff]
    %v182 = vadd.f32 %v155, %v156
    %v183 = vadd.f32 %v181, %v182
    %184 = vst [vmem:[#allocation2] sm:$0xff] %v183
    %v185 = vld [vmem:[#allocation3] sm:$0xff]
    %v186 = vadd.f32 %v179, %v180
    %v187 = vadd.f32 %v185, %v186
    %188 = vst [vmem:[#allocation3] sm:$0xff] %v187
    // Predicated region
    $region26: #{gae_loss.1} parent=1 // pred_check
      %p189 = pneg %p131
    $region27: #{gae_loss.1} parent=1 // pred_check_branch
      %191 = sbr.rel (%p189) target = $region29
    $region28: #{gae_loss.1} parent=1 // pred_region
      %v192 = vld [vmem:[#allocation2] sm:$0xff]
      %193 = vadd.xlane.f32.xlu0 %v192
      %v194 = vpop.xlane.xlu0 %193
      %v195 = vrot.slane %v194, 4
      %v196 = vadd.f32 %v194, %v195
      %v197 = vrot.slane %v196, 2
      %v198 = vadd.f32 %v196, %v197
      %v199 = vrot.slane %v198, 1
      %v200 = vadd.f32 %v198, %v199
      %s201 = vtos %v200
      %s202 = scalar_lea.smem [#allocation4], 0
      %203 = sst [smem:[%s202]] %s201
      %v204 = vld [vmem:[#allocation3] sm:$0xff]
      %205 = vadd.xlane.f32.xlu0 %v204
      %v206 = vpop.xlane.xlu0 %205
      %v207 = vrot.slane %v206, 4
      %v208 = vadd.f32 %v206, %v207
      %v209 = vrot.slane %v208, 2
      %v210 = vadd.f32 %v208, %v209
      %v211 = vrot.slane %v210, 1
      %v212 = vadd.f32 %v210, %v211
      %s213 = vtos %v212
      %s214 = scalar_lea.smem [#allocation4], 1
      %215 = sst [smem:[%s214]] %s213
    $region29: #{gae_loss.1} parent=1 // pred_fallthru
      _
    // Predicated region
    $region30: #{gae_loss.1} parent=1 // pred_check
      _
    $region31: #{gae_loss.1} parent=1 // pred_check_branch
      %217 = sbr.rel (0) target = $region33
    $region32: #{gae_loss.1} parent=1 // pred_region
      %s219 = ssub.s32 16, 16
      %220 = vsyncadd [#allocation5], %s219
      %s222 = sshll.u32 %s5, 4
      %s223 = int_to_ptr.vmem [resolvable:$true] %s222
      %225 = dma.smem_to_vmem [#allocation4], 16, %s223, [#allocation5]
    $region33: #{gae_loss.1} parent=1 // pred_fallthru
      _
    // Predicated region
    $region34: #{gae_loss.1} parent=1 // pred_check
      _
    $region35: #{gae_loss.1} parent=1 // pred_check_branch
      %227 = sbr.rel (0) target = $region37
    $region36: #{gae_loss.1} parent=1 // pred_region
      %228 = dma.done [#allocation5], 16
    $region37: #{gae_loss.1} parent=1 // pred_fallthru
      _
    %229 = sfence
    %230 = vsyncpa [#allocation5], 1

</llo_original>
